<compile_context>
chip_gen: v7x
topology: tpu7x:2x2x1
jax: 0.10.0
libtpu: 0.0.40
codegen_flags: <defaults>
</compile_context>

<pallas_src>
import functools

import jax
import jax.numpy as jnp
from jax import lax
from jax.experimental import pallas as pl
from jax.experimental.pallas import tpu as pltpu


def _patch_drop_kernel(npatch_ref, pos_ref, x_hbm, o_hbm, slab, sem, *,
                       patch_size: int, max_patches: int, denom: float):
    """npatch_ref: SMEM (1,) int32      pos_ref: SMEM (max_patches, 2) int32
       x_hbm/o_hbm: HBM (B*C, H, W) refs (aliased -> same buffer)
       slab: VMEM (B*C, ps, W) scratch  sem: DMA semaphore."""
    del x_hbm  # aliased with o_hbm; all access goes through o_hbm
    ps = patch_size
    W = o_hbm.shape[-1]
    n_active = npatch_ref[0]

    # Lane-index map for the slab rows; only a lane mask is needed because the
    # slab already covers exactly the ps affected sublane rows.
    cols = lax.broadcasted_iota(jnp.int32, (ps, W), 1)

    # Statically unrolled short loop; each iteration fully gated by pl.when so
    # inactive patches (and the p > self.p "return x" case, n_active == 0)
    # cost nothing beyond the aliased identity.
    for i in range(max_patches):

        @pl.when(i < n_active)
        def _(i=i):
            y = pos_ref[i, 0]
            xp = pos_ref[i, 1]

            slab_hbm = o_hbm.at[:, pl.ds(y, ps), :]

            # Fetch only the affected ps-row slab.
            cp_in = pltpu.make_async_copy(slab_hbm, slab, sem)
            cp_in.start()
            cp_in.wait()

            cur = slab[...]
            mask = ((cols >= xp) & (cols < xp + ps))[None, :, :]

            # Mean over batch * channels * ps * ps (accumulate in f32),
            # matching tensor.mean() over all leading dims + patch pixels.
            patch_sum = jnp.sum(jnp.where(mask, cur.astype(jnp.float32), 0.0))
            mean_val = (patch_sum * (1.0 / denom)).astype(cur.dtype)

            # Single read-modify-write of the slab.
            slab[...] = jnp.where(mask, mean_val, cur)

            # Write the slab back before the next (possibly overlapping) patch.
            cp_out = pltpu.make_async_copy(slab, slab_hbm, sem)
            cp_out.start()
            cp_out.wait()


def patch_drop_pallas(x, num_patches, positions, *, patch_size, max_patches):
    """x: (B, C, H, W) float; num_patches: () int32 (0 => identity);
       positions: (max_patches, 2) int32 rows of (y, x), sampled in-range."""
    B, C, H, W = x.shape
    BC = B * C
    denom = float(B * C * patch_size * patch_size)

    x3 = x.reshape(BC, H, W)
    kernel = functools.partial(_patch_drop_kernel,
                               patch_size=patch_size,
                               max_patches=max_patches,
                               denom=denom)

    out3 = pl.pallas_call(
        kernel,
        out_shape=jax.ShapeDtypeStruct((BC, H, W), x.dtype),
        in_specs=[
            pl.BlockSpec(memory_space=pltpu.MemorySpace.SMEM),   # num_patches
            pl.BlockSpec(memory_space=pltpu.MemorySpace.SMEM),   # positions
            pl.BlockSpec(memory_space=pl.ANY),                   # x stays in HBM
        ],
        out_specs=pl.BlockSpec(memory_space=pl.ANY),             # aliased output
        scratch_shapes=[
            pltpu.VMEM((BC, patch_size, W), x.dtype),            # slab buffer
            pltpu.SemaphoreType.DMA(()),                         # DMA semaphore
        ],
        input_output_aliases={2: 0},                             # x3 -> out
        compiler_params=pltpu.CompilerParams(has_side_effects=True),
    )(num_patches.reshape((1,)).astype(jnp.int32),
      positions.astype(jnp.int32),
      x3)

    return out3.reshape(B, C, H, W)


def _reference(x, num_patches, positions, patch_size):
    """Pure-JAX reference of the same sequential masked-mean fill."""
    B, C, H, W = x.shape
    rows = jnp.arange(H)[:, None]
    cols = jnp.arange(W)[None, :]
    denom = float(B * C * patch_size * patch_size)
    out = x
    for i in range(positions.shape[0]):
        y, xp = positions[i, 0], positions[i, 1]
        active = i < num_patches
        m = ((rows >= y) & (rows < y + patch_size) &
             (cols >= xp) & (cols < xp + patch_size) & active)[None, None]
        mean_val = jnp.sum(jnp.where(m, out, 0.0)) / denom
        out = jnp.where(m, mean_val, out)
    return out


if __name__ == "__main__":
    # Small shapes consistent with the module: NCHW image batch.
    B, C, H, W = 2, 4, 16, 16
    patch_size = 8
    max_patches = 3
    p = 1.0  # force the transform branch for the demo (module default is 0.3)

    key = jax.random.PRNGKey(0)
    k_x, k_apply, k_num, k_y, k_xp = jax.random.split(key, 5)

    x = jax.random.normal(k_x, (B, C, H, W), dtype=jnp.float32)

    # Deterministic replacements for random.random()/random.randint():
    apply = jax.random.uniform(k_apply) <= p
    nump = jax.random.randint(k_num, (), 1, max_patches + 1)
    nump = jnp.where(apply, nump, 0).astype(jnp.int32)        # 0 => identity
    ys = jax.random.randint(k_y, (max_patches,), 0, H - patch_size + 1)
    xps = jax.random.randint(k_xp, (max_patches,), 0, W - patch_size + 1)
    positions = jnp.stack([ys, xps], axis=-1).astype(jnp.int32)

    # Compute the reference first (the kernel output aliases its input buffer).
    ref = _reference(x, nump, positions, patch_size)

    out = patch_drop_pallas(x, nump, positions,
                            patch_size=patch_size, max_patches=max_patches)
    out = jax.block_until_ready(out)

    assert out.shape == x.shape and out.dtype == x.dtype
    assert jnp.allclose(out, ref, atol=1e-4), "mismatch vs pure-JAX reference"

    print("KERNEL_OK")
</pallas_src>

<mosaic_0001>
module attributes {stable_mosaic.version = 11 : i64} {
  func.func @_patch_drop_kernel(%arg0: memref<1xi32, #tpu.memory_space<smem>>, %arg1: memref<3x2xi32, #tpu.memory_space<smem>>, %arg2: memref<8x16x16xf32, #tpu.memory_space<any>>, %arg3: memref<8x16x16xf32, #tpu.memory_space<any>>, %arg4: memref<8x8x16xf32, #tpu.memory_space<vmem>>, %arg5: memref<!tpu.dma_semaphore, #tpu.memory_space<semaphore_mem>>) attributes {dimension_semantics = [], scalar_prefetch = 0 : i64, scratch_operands = 2 : i64, tpu.core_type = #tpu.core_type<tc>} {
    %c0 = arith.constant 0 : index
    %0 = memref.load %arg0[%c0] : memref<1xi32, #tpu.memory_space<smem>>
    %1 = tpu.iota {dimensions = array<i32: 1>} : vector<8x16xi32>
    %c0_i32 = arith.constant 0 : i32
    %2 = arith.cmpi sgt, %0, %c0_i32 : i32
    %3 = arith.extui %2 : i1 to i32
    %c0_i32_0 = arith.constant 0 : i32
    %4 = arith.cmpi ne, %3, %c0_i32_0 : i32
    scf.if %4 {
      %c0_3 = arith.constant 0 : index
      %c0_4 = arith.constant 0 : index
      %11 = memref.load %arg1[%c0_3, %c0_4] : memref<3x2xi32, #tpu.memory_space<smem>>
      %c0_5 = arith.constant 0 : index
      %c1 = arith.constant 1 : index
      %12 = memref.load %arg1[%c0_5, %c1] : memref<3x2xi32, #tpu.memory_space<smem>>
      %c0_i32_6 = arith.constant 0 : i32
      %c0_i32_7 = arith.constant 0 : i32
      %13 = tpu.memref_slice %arg3[%c0_i32_6, %11, %c0_i32_7] : memref<8x16x16xf32, #tpu.memory_space<any>> -> memref<8x8x16xf32, #tpu.memory_space<any>>
      tpu.enqueue_dma source(%13 : memref<8x8x16xf32, #tpu.memory_space<any>>) target(%arg4 : memref<8x8x16xf32, #tpu.memory_space<vmem>>) target_semaphore(%arg5 : memref<!tpu.dma_semaphore, #tpu.memory_space<semaphore_mem>>)
      %c0_i32_8 = arith.constant 0 : i32
      %c0_i32_9 = arith.constant 0 : i32
      %14 = tpu.memref_slice %arg3[%c0_i32_8, %11, %c0_i32_9] : memref<8x16x16xf32, #tpu.memory_space<any>> -> memref<8x8x16xf32, #tpu.memory_space<any>>
      tpu.wait_dma2 semaphore(%arg5 : memref<!tpu.dma_semaphore, #tpu.memory_space<semaphore_mem>>) src(%14 : memref<8x8x16xf32, #tpu.memory_space<any>>) dst(%arg4 : memref<8x8x16xf32, #tpu.memory_space<vmem>>)
      %c0_10 = arith.constant 0 : index
      %c0_11 = arith.constant 0 : index
      %c0_12 = arith.constant 0 : index
      %15 = vector.load %arg4[%c0_10, %c0_11, %c0_12] : memref<8x8x16xf32, #tpu.memory_space<vmem>>, vector<8x8x16xf32>
      %16 = vector.broadcast %12 : i32 to vector<8x16xi32>
      %17 = arith.cmpi sge, %1, %16 : vector<8x16xi32>
      %c8_i32 = arith.constant 8 : i32
      %18 = arith.addi %12, %c8_i32 : i32
      %19 = vector.broadcast %18 : i32 to vector<8x16xi32>
      %20 = arith.cmpi slt, %1, %19 : vector<8x16xi32>
      %21 = arith.andi %17, %20 : vector<8x16xi1>
      %22 = vector.shape_cast %21 : vector<8x16xi1> to vector<1x8x16xi1>
      %cst = arith.constant 0.000000e+00 : f32
      %23 = vector.shape_cast %22 : vector<1x8x16xi1> to vector<1x8x16xi1>
      %24 = vector.broadcast %23 : vector<1x8x16xi1> to vector<8x8x16xi1>
      %25 = vector.broadcast %cst : f32 to vector<8x8x16xf32>
      %26 = arith.select %24, %15, %25 : vector<8x8x16xi1>, vector<8x8x16xf32>
      %27 = vector.shape_cast %26 : vector<8x8x16xf32> to vector<1x8x8x16xf32>
      %cst_13 = arith.constant dense<0.000000e+00> : vector<1xf32>
      %28 = vector.multi_reduction <add>, %27, %cst_13 [1, 2, 3] : vector<1x8x8x16xf32> to vector<1xf32>
      %29 = vector.shape_cast %28 : vector<1xf32> to vector<1x1x1x1xf32>
      %30 = vector.extract %29[0, 0, 0, 0] : f32 from vector<1x1x1x1xf32>
      %cst_14 = arith.constant 0.001953125 : f32
      %31 = arith.mulf %30, %cst_14 : f32
      %32 = vector.shape_cast %22 : vector<1x8x16xi1> to vector<1x8x16xi1>
      %33 = vector.broadcast %32 : vector<1x8x16xi1> to vector<8x8x16xi1>
      %34 = vector.broadcast %31 : f32 to vector<8x8x16xf32>
      %35 = arith.select %33, %34, %15 : vector<8x8x16xi1>, vector<8x8x16xf32>
      %c0_15 = arith.constant 0 : index
      %c0_16 = arith.constant 0 : index
      %c0_17 = arith.constant 0 : index
      %36 = vector.load %arg4[%c0_15, %c0_16, %c0_17] : memref<8x8x16xf32, #tpu.memory_space<vmem>>, vector<8x8x16xf32>
      tpu.vector_store %arg4[%c0_15, %c0_16, %c0_17], %35 {strides = array<i32>} : memref<8x8x16xf32, #tpu.memory_space<vmem>>, vector<8x8x16xf32>,
      %c0_i32_18 = arith.constant 0 : i32
      %c0_i32_19 = arith.constant 0 : i32
      %37 = tpu.memref_slice %arg3[%c0_i32_18, %11, %c0_i32_19] : memref<8x16x16xf32, #tpu.memory_space<any>> -> memref<8x8x16xf32, #tpu.memory_space<any>>
      tpu.enqueue_dma source(%arg4 : memref<8x8x16xf32, #tpu.memory_space<vmem>>) target(%37 : memref<8x8x16xf32, #tpu.memory_space<any>>) target_semaphore(%arg5 : memref<!tpu.dma_semaphore, #tpu.memory_space<semaphore_mem>>)
      %c0_i32_20 = arith.constant 0 : i32
      %c0_i32_21 = arith.constant 0 : i32
      %38 = tpu.memref_slice %arg3[%c0_i32_20, %11, %c0_i32_21] : memref<8x16x16xf32, #tpu.memory_space<any>> -> memref<8x8x16xf32, #tpu.memory_space<any>>
      tpu.wait_dma2 semaphore(%arg5 : memref<!tpu.dma_semaphore, #tpu.memory_space<semaphore_mem>>) src(%arg4 : memref<8x8x16xf32, #tpu.memory_space<vmem>>) dst(%38 : memref<8x8x16xf32, #tpu.memory_space<any>>)
    } else {
    }
    %c1_i32 = arith.constant 1 : i32
    %5 = arith.cmpi sgt, %0, %c1_i32 : i32
    %6 = arith.extui %5 : i1 to i32
    %c0_i32_1 = arith.constant 0 : i32
    %7 = arith.cmpi ne, %6, %c0_i32_1 : i32
    scf.if %7 {
      %c1 = arith.constant 1 : index
      %c0_3 = arith.constant 0 : index
      %11 = memref.load %arg1[%c1, %c0_3] : memref<3x2xi32, #tpu.memory_space<smem>>
      %c1_4 = arith.constant 1 : index
      %c1_5 = arith.constant 1 : index
      %12 = memref.load %arg1[%c1_4, %c1_5] : memref<3x2xi32, #tpu.memory_space<smem>>
      %c0_i32_6 = arith.constant 0 : i32
      %c0_i32_7 = arith.constant 0 : i32
      %13 = tpu.memref_slice %arg3[%c0_i32_6, %11, %c0_i32_7] : memref<8x16x16xf32, #tpu.memory_space<any>> -> memref<8x8x16xf32, #tpu.memory_space<any>>
      tpu.enqueue_dma source(%13 : memref<8x8x16xf32, #tpu.memory_space<any>>) target(%arg4 : memref<8x8x16xf32, #tpu.memory_space<vmem>>) target_semaphore(%arg5 : memref<!tpu.dma_semaphore, #tpu.memory_space<semaphore_mem>>)
      %c0_i32_8 = arith.constant 0 : i32
      %c0_i32_9 = arith.constant 0 : i32
      %14 = tpu.memref_slice %arg3[%c0_i32_8, %11, %c0_i32_9] : memref<8x16x16xf32, #tpu.memory_space<any>> -> memref<8x8x16xf32, #tpu.memory_space<any>>
      tpu.wait_dma2 semaphore(%arg5 : memref<!tpu.dma_semaphore, #tpu.memory_space<semaphore_mem>>) src(%14 : memref<8x8x16xf32, #tpu.memory_space<any>>) dst(%arg4 : memref<8x8x16xf32, #tpu.memory_space<vmem>>)
      %c0_10 = arith.constant 0 : index
      %c0_11 = arith.constant 0 : index
      %c0_12 = arith.constant 0 : index
      %15 = vector.load %arg4[%c0_10, %c0_11, %c0_12] : memref<8x8x16xf32, #tpu.memory_space<vmem>>, vector<8x8x16xf32>
      %16 = vector.broadcast %12 : i32 to vector<8x16xi32>
      %17 = arith.cmpi sge, %1, %16 : vector<8x16xi32>
      %c8_i32 = arith.constant 8 : i32
      %18 = arith.addi %12, %c8_i32 : i32
      %19 = vector.broadcast %18 : i32 to vector<8x16xi32>
      %20 = arith.cmpi slt, %1, %19 : vector<8x16xi32>
      %21 = arith.andi %17, %20 : vector<8x16xi1>
      %22 = vector.shape_cast %21 : vector<8x16xi1> to vector<1x8x16xi1>
      %cst = arith.constant 0.000000e+00 : f32
      %23 = vector.shape_cast %22 : vector<1x8x16xi1> to vector<1x8x16xi1>
      %24 = vector.broadcast %23 : vector<1x8x16xi1> to vector<8x8x16xi1>
      %25 = vector.broadcast %cst : f32 to vector<8x8x16xf32>
      %26 = arith.select %24, %15, %25 : vector<8x8x16xi1>, vector<8x8x16xf32>
      %27 = vector.shape_cast %26 : vector<8x8x16xf32> to vector<1x8x8x16xf32>
      %cst_13 = arith.constant dense<0.000000e+00> : vector<1xf32>
      %28 = vector.multi_reduction <add>, %27, %cst_13 [1, 2, 3] : vector<1x8x8x16xf32> to vector<1xf32>
      %29 = vector.shape_cast %28 : vector<1xf32> to vector<1x1x1x1xf32>
      %30 = vector.extract %29[0, 0, 0, 0] : f32 from vector<1x1x1x1xf32>
      %cst_14 = arith.constant 0.001953125 : f32
      %31 = arith.mulf %30, %cst_14 : f32
      %32 = vector.shape_cast %22 : vector<1x8x16xi1> to vector<1x8x16xi1>
      %33 = vector.broadcast %32 : vector<1x8x16xi1> to vector<8x8x16xi1>
      %34 = vector.broadcast %31 : f32 to vector<8x8x16xf32>
      %35 = arith.select %33, %34, %15 : vector<8x8x16xi1>, vector<8x8x16xf32>
      %c0_15 = arith.constant 0 : index
      %c0_16 = arith.constant 0 : index
      %c0_17 = arith.constant 0 : index
      %36 = vector.load %arg4[%c0_15, %c0_16, %c0_17] : memref<8x8x16xf32, #tpu.memory_space<vmem>>, vector<8x8x16xf32>
      tpu.vector_store %arg4[%c0_15, %c0_16, %c0_17], %35 {strides = array<i32>} : memref<8x8x16xf32, #tpu.memory_space<vmem>>, vector<8x8x16xf32>,
      %c0_i32_18 = arith.constant 0 : i32
      %c0_i32_19 = arith.constant 0 : i32
      %37 = tpu.memref_slice %arg3[%c0_i32_18, %11, %c0_i32_19] : memref<8x16x16xf32, #tpu.memory_space<any>> -> memref<8x8x16xf32, #tpu.memory_space<any>>
      tpu.enqueue_dma source(%arg4 : memref<8x8x16xf32, #tpu.memory_space<vmem>>) target(%37 : memref<8x8x16xf32, #tpu.memory_space<any>>) target_semaphore(%arg5 : memref<!tpu.dma_semaphore, #tpu.memory_space<semaphore_mem>>)
      %c0_i32_20 = arith.constant 0 : i32
      %c0_i32_21 = arith.constant 0 : i32
      %38 = tpu.memref_slice %arg3[%c0_i32_20, %11, %c0_i32_21] : memref<8x16x16xf32, #tpu.memory_space<any>> -> memref<8x8x16xf32, #tpu.memory_space<any>>
      tpu.wait_dma2 semaphore(%arg5 : memref<!tpu.dma_semaphore, #tpu.memory_space<semaphore_mem>>) src(%arg4 : memref<8x8x16xf32, #tpu.memory_space<vmem>>) dst(%38 : memref<8x8x16xf32, #tpu.memory_space<any>>)
    } else {
    }
    %c2_i32 = arith.constant 2 : i32
    %8 = arith.cmpi sgt, %0, %c2_i32 : i32
    %9 = arith.extui %8 : i1 to i32
    %c0_i32_2 = arith.constant 0 : i32
    %10 = arith.cmpi ne, %9, %c0_i32_2 : i32
    scf.if %10 {
      %c2 = arith.constant 2 : index
      %c0_3 = arith.constant 0 : index
      %11 = memref.load %arg1[%c2, %c0_3] : memref<3x2xi32, #tpu.memory_space<smem>>
      %c2_4 = arith.constant 2 : index
      %c1 = arith.constant 1 : index
      %12 = memref.load %arg1[%c2_4, %c1] : memref<3x2xi32, #tpu.memory_space<smem>>
      %c0_i32_5 = arith.constant 0 : i32
      %c0_i32_6 = arith.constant 0 : i32
      %13 = tpu.memref_slice %arg3[%c0_i32_5, %11, %c0_i32_6] : memref<8x16x16xf32, #tpu.memory_space<any>> -> memref<8x8x16xf32, #tpu.memory_space<any>>
      tpu.enqueue_dma source(%13 : memref<8x8x16xf32, #tpu.memory_space<any>>) target(%arg4 : memref<8x8x16xf32, #tpu.memory_space<vmem>>) target_semaphore(%arg5 : memref<!tpu.dma_semaphore, #tpu.memory_space<semaphore_mem>>)
      %c0_i32_7 = arith.constant 0 : i32
      %c0_i32_8 = arith.constant 0 : i32
      %14 = tpu.memref_slice %arg3[%c0_i32_7, %11, %c0_i32_8] : memref<8x16x16xf32, #tpu.memory_space<any>> -> memref<8x8x16xf32, #tpu.memory_space<any>>
      tpu.wait_dma2 semaphore(%arg5 : memref<!tpu.dma_semaphore, #tpu.memory_space<semaphore_mem>>) src(%14 : memref<8x8x16xf32, #tpu.memory_space<any>>) dst(%arg4 : memref<8x8x16xf32, #tpu.memory_space<vmem>>)
      %c0_9 = arith.constant 0 : index
      %c0_10 = arith.constant 0 : index
      %c0_11 = arith.constant 0 : index
      %15 = vector.load %arg4[%c0_9, %c0_10, %c0_11] : memref<8x8x16xf32, #tpu.memory_space<vmem>>, vector<8x8x16xf32>
      %16 = vector.broadcast %12 : i32 to vector<8x16xi32>
      %17 = arith.cmpi sge, %1, %16 : vector<8x16xi32>
      %c8_i32 = arith.constant 8 : i32
      %18 = arith.addi %12, %c8_i32 : i32
      %19 = vector.broadcast %18 : i32 to vector<8x16xi32>
      %20 = arith.cmpi slt, %1, %19 : vector<8x16xi32>
      %21 = arith.andi %17, %20 : vector<8x16xi1>
      %22 = vector.shape_cast %21 : vector<8x16xi1> to vector<1x8x16xi1>
      %cst = arith.constant 0.000000e+00 : f32
      %23 = vector.shape_cast %22 : vector<1x8x16xi1> to vector<1x8x16xi1>
      %24 = vector.broadcast %23 : vector<1x8x16xi1> to vector<8x8x16xi1>
      %25 = vector.broadcast %cst : f32 to vector<8x8x16xf32>
      %26 = arith.select %24, %15, %25 : vector<8x8x16xi1>, vector<8x8x16xf32>
      %27 = vector.shape_cast %26 : vector<8x8x16xf32> to vector<1x8x8x16xf32>
      %cst_12 = arith.constant dense<0.000000e+00> : vector<1xf32>
      %28 = vector.multi_reduction <add>, %27, %cst_12 [1, 2, 3] : vector<1x8x8x16xf32> to vector<1xf32>
      %29 = vector.shape_cast %28 : vector<1xf32> to vector<1x1x1x1xf32>
      %30 = vector.extract %29[0, 0, 0, 0] : f32 from vector<1x1x1x1xf32>
      %cst_13 = arith.constant 0.001953125 : f32
      %31 = arith.mulf %30, %cst_13 : f32
      %32 = vector.shape_cast %22 : vector<1x8x16xi1> to vector<1x8x16xi1>
      %33 = vector.broadcast %32 : vector<1x8x16xi1> to vector<8x8x16xi1>
      %34 = vector.broadcast %31 : f32 to vector<8x8x16xf32>
      %35 = arith.select %33, %34, %15 : vector<8x8x16xi1>, vector<8x8x16xf32>
      %c0_14 = arith.constant 0 : index
      %c0_15 = arith.constant 0 : index
      %c0_16 = arith.constant 0 : index
      %36 = vector.load %arg4[%c0_14, %c0_15, %c0_16] : memref<8x8x16xf32, #tpu.memory_space<vmem>>, vector<8x8x16xf32>
      tpu.vector_store %arg4[%c0_14, %c0_15, %c0_16], %35 {strides = array<i32>} : memref<8x8x16xf32, #tpu.memory_space<vmem>>, vector<8x8x16xf32>,
      %c0_i32_17 = arith.constant 0 : i32
      %c0_i32_18 = arith.constant 0 : i32
      %37 = tpu.memref_slice %arg3[%c0_i32_17, %11, %c0_i32_18] : memref<8x16x16xf32, #tpu.memory_space<any>> -> memref<8x8x16xf32, #tpu.memory_space<any>>
      tpu.enqueue_dma source(%arg4 : memref<8x8x16xf32, #tpu.memory_space<vmem>>) target(%37 : memref<8x8x16xf32, #tpu.memory_space<any>>) target_semaphore(%arg5 : memref<!tpu.dma_semaphore, #tpu.memory_space<semaphore_mem>>)
      %c0_i32_19 = arith.constant 0 : i32
      %c0_i32_20 = arith.constant 0 : i32
      %38 = tpu.memref_slice %arg3[%c0_i32_19, %11, %c0_i32_20] : memref<8x16x16xf32, #tpu.memory_space<any>> -> memref<8x8x16xf32, #tpu.memory_space<any>>
      tpu.wait_dma2 semaphore(%arg5 : memref<!tpu.dma_semaphore, #tpu.memory_space<semaphore_mem>>) src(%arg4 : memref<8x8x16xf32, #tpu.memory_space<vmem>>) dst(%38 : memref<8x8x16xf32, #tpu.memory_space<any>>)
    } else {
    }
    return
  }
}

</mosaic_0001>

<llo_original>
// kernel: tpu_custom_call.1
$region0: #{tpu_custom_call.1}
  #allocation0 [shape = 'u32[]', space=smem, size = 0x4, offset = 0x4, fixed_abs, tag = 'smem constant byte address 0x4 - core index']
  #allocation1 [shape = 'u32[144,128]{1,0:T(1,128)}', space=vmem, size = 0x12000, scoped, tag = 'internal scratch']
  #allocation2 [shape = 'f32[8,8,16]{2,1,0:T(8,128)}', space=vmem, size = 0x8000, scoped, tag = 'scratch operand']
  #allocation3 [shape = 's32[1]{0}', space=sflag, size = 0x4, scoped, tag = 'scratch operand']
  #allocation4 [shape = 's32[1]{0:T(128)S(6)}', space=smem, size = 0x200, scoped, tag = 'scoped memory for tpu_custom_call.1']
  #allocation7 [shape = 's32[]', space=sflag, size = 0x4, offset = 0, fixed_abs, tag = 'sflag constant byte address 0x0 - dummy sync flag']
  #allocation8 [shape = 's32[]', space=sflag, size = 0x4, offset = 0, fixed_abs, tag = 'sflag constant byte address 0x0 - dummy sync flag']
  #allocation9 [shape = 's32[]', space=sflag, size = 0x4, offset = 0, fixed_abs, tag = 'sflag constant byte address 0x0 - dummy sync flag']
  #allocation10 [shape = 's32[]', space=sflag, size = 0x4, offset = 0, fixed_abs, tag = 'sflag constant byte address 0x0 - dummy sync flag']
  #allocation11 [shape = 's32[]', space=sflag, size = 0x4, offset = 0, fixed_abs, tag = 'sflag constant byte address 0x0 - dummy sync flag']
  #allocation12 [shape = 's32[]', space=sflag, size = 0x4, offset = 0, fixed_abs, tag = 'sflag constant byte address 0x0 - dummy sync flag']
  %s0 = inlined_call_operand.<no memory space> [shape: s32[1], index: 0, kind: input, shape index: {}]
  %s1 = inlined_call_operand.vmem [shape: s32[3,2], index: 1, kind: input, shape index: {}]
  %s2 = inlined_call_operand.hbm [shape: f32[8,16,16], index: 2, kind: input, shape index: {}, may-alias: {2,3}]
  %s3 = inlined_call_operand.hbm [shape: f32[8,16,16], index: 3, kind: output, shape index: {}, may-alias: {2,3}]
  %s4 = sld [smem:[#allocation0]]
  $region26: #{tpu_custom_call.1} parent=0
    _
  %s6 = ssub.s32 1, %s4
  %s7 = scalar_select 0, %s6, %s4
  %8 = sst [smem:[#allocation4]] %s0
  $region1: #{tpu_custom_call.1} parent=0
    #allocation5 [shape = 'u8[2048]{0}', space=smem, size = 0x800, scoped, tag = 'input window, operand 1, single buffered']
    #allocation6 [shape = 's32[1]{0}', space=sflag, size = 0x4, scoped, tag = 'scoped memory for tpu_custom_call.1']
    %9 = vsyncpa [#allocation6], 0
    // Predicated region
    $region2: #{tpu_custom_call.1} parent=1 // pred_check
      _
    $region3: #{tpu_custom_call.1} parent=1 // pred_check_branch
      %11 = sbr.rel (0) target = $region5
    $region4: #{tpu_custom_call.1} parent=1 // pred_region
      _
    $region5: #{tpu_custom_call.1} parent=1 // pred_fallthru
      _
    // Predicated region
    $region6: #{tpu_custom_call.1} parent=1 // pred_check
      _
    $region7: #{tpu_custom_call.1} parent=1 // pred_check_branch
      %13 = sbr.rel (0) target = $region9
    $region8: #{tpu_custom_call.1} parent=1 // pred_region
      %s15 = ssub.s32 64, 64
      %16 = vsyncadd [#allocation6], %s15
      %s18 = sshll.u32 %s1, 4
      %s19 = int_to_ptr.vmem [resolvable:$true] %s18
      %21 = dma.vmem_to_smem %s19, 64, [#allocation5], [#allocation6]
    $region9: #{tpu_custom_call.1} parent=1 // pred_fallthru
      _
    // Predicated region
    $region10: #{tpu_custom_call.1} parent=1 // pred_check
      _
    $region11: #{tpu_custom_call.1} parent=1 // pred_check_branch
      %23 = sbr.rel (0) target = $region13
    $region12: #{tpu_custom_call.1} parent=1 // pred_region
      %24 = dma.done [#allocation6], 64
    $region13: #{tpu_custom_call.1} parent=1 // pred_fallthru
      _
    %25 = sfence
    %s26 = sld [smem:[#allocation4]]
    %v27 = vlaneseq
    %v28 = vand.u32 %v27, 127
    %p29 = scmp.gt.s32.totalorder %s26, 0
    // Predicated region
    $region14: #{tpu_custom_call.1} parent=1 // pred_check
      %p30 = pneg %p29
    $region15: #{tpu_custom_call.1} parent=1 // pred_check_branch
      %32 = sbr.rel (%p30) target = $region17
    $region16: #{tpu_custom_call.1} parent=1 // pred_region
      %s33 = sld [smem:[#allocation5]]
      %s34 = sld [smem:[#allocation5 + $0x1]]
      %s35 = smul.addr %s33, 16
      %s36 = scalar_lea.hbm %s3, %s35
      %s38 = sshll.u32 [#allocation2], 4
      %s39 = int_to_ptr.vmem [resolvable:$true] %s38
      %41 = dma.hbm_to_vmem [thread:$0]  %s36, 1024, %s39, [#allocation3], 256, 128, 8
      %s42 = smul.u32 8, 8
      %s43 = smul.u32 %s42, 1
      %s44 = sshll.u32 %s43, 4
      %45 = dma.done [#allocation3], %s44
      %v46 = vld [vmem:[#allocation2] sm:$0xff]
      %v47 = vld [vmem:[#allocation2 + $0x8] sm:$0xff]
      %v48 = vld [vmem:[#allocation2 + $0x10] sm:$0xff]
      %v49 = vld [vmem:[#allocation2 + $0x18] sm:$0xff]
      %v50 = vld [vmem:[#allocation2 + $0x20] sm:$0xff]
      %v51 = vld [vmem:[#allocation2 + $0x28] sm:$0xff]
      %v52 = vld [vmem:[#allocation2 + $0x30] sm:$0xff]
      %v53 = vld [vmem:[#allocation2 + $0x38] sm:$0xff]
      %v54 = vstv %s34
      %vm55 = vcmp.ge.s32.totalorder %v28, %v54
      %s56 = sadd.s32 %s34, 8
      %v57 = vstv %s56
      %vm58 = vcmp.lt.s32.totalorder %v28, %v57
      %vm59 = vmand %vm55, %vm58
      %v60 = vsel %vm59, 1, 0
      %vm61 = vcmp.eq.s32.totalorder %v60, 1
      %v62 = vsel %vm61, %v46, 0.0
      %v63 = vsel %vm61, %v47, 0.0
      %v64 = vsel %vm61, %v48, 0.0
      %v65 = vsel %vm61, %v49, 0.0
      %v66 = vsel %vm61, %v50, 0.0
      %v67 = vsel %vm61, %v51, 0.0
      %v68 = vsel %vm61, %v52, 0.0
      %v69 = vsel %vm61, %v53, 0.0
      %vm70 = vcmask 130048
      %v71 = vsel %vm70, %v62, 0.0
      %v72 = vsel %vm70, %v63, 0.0
      %v73 = vadd.f32 %v71, %v72
      %v74 = vsel %vm70, %v64, 0.0
      %v75 = vadd.f32 %v73, %v74
      %v76 = vsel %vm70, %v65, 0.0
      %v77 = vadd.f32 %v75, %v76
      %v78 = vsel %vm70, %v66, 0.0
      %v79 = vadd.f32 %v77, %v78
      %v80 = vsel %vm70, %v67, 0.0
      %v81 = vadd.f32 %v79, %v80
      %v82 = vsel %vm70, %v68, 0.0
      %v83 = vadd.f32 %v81, %v82
      %v84 = vsel %vm70, %v69, 0.0
      %v85 = vadd.f32 %v83, %v84
      %86 = vadd.xlane.f32.xlu0 %v85
      %v87 = vpop.xlane.xlu0 %86
      %v88 = vrot.slane %v87, 4
      %v89 = vadd.f32 %v87, %v88
      %v90 = vrot.slane %v89, 2
      %v91 = vadd.f32 %v89, %v90
      %v92 = vrot.slane %v91, 1
      %v93 = vadd.f32 %v91, %v92
      %s94 = vtos %v93
      %s95 = smul.f32 %s94, 0.001953125
      %v96 = vstv %s95
      %v97 = vsel %vm61, %v96, %v46
      %v98 = vsel %vm61, %v96, %v47
      %v99 = vsel %vm61, %v96, %v48
      %v100 = vsel %vm61, %v96, %v49
      %v101 = vsel %vm61, %v96, %v50
      %v102 = vsel %vm61, %v96, %v51
      %v103 = vsel %vm61, %v96, %v52
      %v104 = vsel %vm61, %v96, %v53
      %105 = vst.msk [vmem:[#allocation2] sm:$0xff] %vm70, %v97
      %106 = vst.msk [vmem:[#allocation2 + $0x8] sm:$0xff] %vm70, %v98
      %107 = vst.msk [vmem:[#allocation2 + $0x10] sm:$0xff] %vm70, %v99
      %108 = vst.msk [vmem:[#allocation2 + $0x18] sm:$0xff] %vm70, %v100
      %109 = vst.msk [vmem:[#allocation2 + $0x20] sm:$0xff] %vm70, %v101
      %110 = vst.msk [vmem:[#allocation2 + $0x28] sm:$0xff] %vm70, %v102
      %111 = vst.msk [vmem:[#allocation2 + $0x30] sm:$0xff] %vm70, %v103
      %112 = vst.msk [vmem:[#allocation2 + $0x38] sm:$0xff] %vm70, %v104
      %s114 = sshll.u32 [#allocation2], 4
      %s115 = int_to_ptr.vmem [resolvable:$true] %s114
      %117 = dma.vmem_to_hbm [thread:$0]  %s115, 1024, %s36, [#allocation3], 128, 256, 8
      %s118 = sshll.u32 %s43, 4
      %119 = dma.done [#allocation3], %s118
    $region17: #{tpu_custom_call.1} parent=1 // pred_fallthru
      _
    %p120 = scmp.gt.s32.totalorder %s26, 1
    // Predicated region
    $region18: #{tpu_custom_call.1} parent=1 // pred_check
      %p121 = pneg %p120
    $region19: #{tpu_custom_call.1} parent=1 // pred_check_branch
      %123 = sbr.rel (%p121) target = $region21
    $region20: #{tpu_custom_call.1} parent=1 // pred_region
      %s124 = sld [smem:[#allocation5 + $0x80]]
      %s125 = sld [smem:[#allocation5 + $0x81]]
      %s126 = smul.addr %s124, 16
      %s127 = scalar_lea.hbm %s3, %s126
      %s129 = sshll.u32 [#allocation2], 4
      %s130 = int_to_ptr.vmem [resolvable:$true] %s129
      %132 = dma.hbm_to_vmem [thread:$0]  %s127, 1024, %s130, [#allocation3], 256, 128, 8
      %s133 = smul.u32 8, 8
      %s134 = smul.u32 %s133, 1
      %s135 = sshll.u32 %s134, 4
      %136 = dma.done [#allocation3], %s135
      %v137 = vld [vmem:[#allocation2] sm:$0xff]
      %v138 = vld [vmem:[#allocation2 + $0x8] sm:$0xff]
      %v139 = vld [vmem:[#allocation2 + $0x10] sm:$0xff]
      %v140 = vld [vmem:[#allocation2 + $0x18] sm:$0xff]
      %v141 = vld [vmem:[#allocation2 + $0x20] sm:$0xff]
      %v142 = vld [vmem:[#allocation2 + $0x28] sm:$0xff]
      %v143 = vld [vmem:[#allocation2 + $0x30] sm:$0xff]
      %v144 = vld [vmem:[#allocation2 + $0x38] sm:$0xff]
      %v145 = vstv %s125
      %vm146 = vcmp.ge.s32.totalorder %v28, %v145
      %s147 = sadd.s32 %s125, 8
      %v148 = vstv %s147
      %vm149 = vcmp.lt.s32.totalorder %v28, %v148
      %vm150 = vmand %vm146, %vm149
      %v151 = vsel %vm150, 1, 0
      %vm152 = vcmp.eq.s32.totalorder %v151, 1
      %v153 = vsel %vm152, %v137, 0.0
      %v154 = vsel %vm152, %v138, 0.0
      %v155 = vsel %vm152, %v139, 0.0
      %v156 = vsel %vm152, %v140, 0.0
      %v157 = vsel %vm152, %v141, 0.0
      %v158 = vsel %vm152, %v142, 0.0
      %v159 = vsel %vm152, %v143, 0.0
      %v160 = vsel %vm152, %v144, 0.0
      %vm161 = vcmask 130048
      %v162 = vsel %vm161, %v153, 0.0
      %v163 = vsel %vm161, %v154, 0.0
      %v164 = vadd.f32 %v162, %v163
      %v165 = vsel %vm161, %v155, 0.0
      %v166 = vadd.f32 %v164, %v165
      %v167 = vsel %vm161, %v156, 0.0
      %v168 = vadd.f32 %v166, %v167
      %v169 = vsel %vm161, %v157, 0.0
      %v170 = vadd.f32 %v168, %v169
      %v171 = vsel %vm161, %v158, 0.0
      %v172 = vadd.f32 %v170, %v171
      %v173 = vsel %vm161, %v159, 0.0
      %v174 = vadd.f32 %v172, %v173
      %v175 = vsel %vm161, %v160, 0.0
      %v176 = vadd.f32 %v174, %v175
      %177 = vadd.xlane.f32.xlu0 %v176
      %v178 = vpop.xlane.xlu0 %177
      %v179 = vrot.slane %v178, 4
      %v180 = vadd.f32 %v178, %v179
      %v181 = vrot.slane %v180, 2
      %v182 = vadd.f32 %v180, %v181
      %v183 = vrot.slane %v182, 1
      %v184 = vadd.f32 %v182, %v183
      %s185 = vtos %v184
      %s186 = smul.f32 %s185, 0.001953125
      %v187 = vstv %s186
      %v188 = vsel %vm152, %v187, %v137
      %v189 = vsel %vm152, %v187, %v138
      %v190 = vsel %vm152, %v187, %v139
      %v191 = vsel %vm152, %v187, %v140
      %v192 = vsel %vm152, %v187, %v141
      %v193 = vsel %vm152, %v187, %v142
      %v194 = vsel %vm152, %v187, %v143
      %v195 = vsel %vm152, %v187, %v144
      %196 = vst.msk [vmem:[#allocation2] sm:$0xff] %vm161, %v188
      %197 = vst.msk [vmem:[#allocation2 + $0x8] sm:$0xff] %vm161, %v189
      %198 = vst.msk [vmem:[#allocation2 + $0x10] sm:$0xff] %vm161, %v190
      %199 = vst.msk [vmem:[#allocation2 + $0x18] sm:$0xff] %vm161, %v191
      %200 = vst.msk [vmem:[#allocation2 + $0x20] sm:$0xff] %vm161, %v192
      %201 = vst.msk [vmem:[#allocation2 + $0x28] sm:$0xff] %vm161, %v193
      %202 = vst.msk [vmem:[#allocation2 + $0x30] sm:$0xff] %vm161, %v194
      %203 = vst.msk [vmem:[#allocation2 + $0x38] sm:$0xff] %vm161, %v195
      %s205 = sshll.u32 [#allocation2], 4
      %s206 = int_to_ptr.vmem [resolvable:$true] %s205
      %208 = dma.vmem_to_hbm [thread:$0]  %s206, 1024, %s127, [#allocation3], 128, 256, 8
      %s209 = sshll.u32 %s134, 4
      %210 = dma.done [#allocation3], %s209
    $region21: #{tpu_custom_call.1} parent=1 // pred_fallthru
      _
    %p211 = scmp.gt.s32.totalorder %s26, 2
    // Predicated region
    $region22: #{tpu_custom_call.1} parent=1 // pred_check
      %p212 = pneg %p211
    $region23: #{tpu_custom_call.1} parent=1 // pred_check_branch
      %214 = sbr.rel (%p212) target = $region25
    $region24: #{tpu_custom_call.1} parent=1 // pred_region
      %s215 = sld [smem:[#allocation5 + $0x100]]
      %s216 = sld [smem:[#allocation5 + $0x101]]
      %s217 = smul.addr %s215, 16
      %s218 = scalar_lea.hbm %s3, %s217
      %s220 = sshll.u32 [#allocation2], 4
      %s221 = int_to_ptr.vmem [resolvable:$true] %s220
      %223 = dma.hbm_to_vmem [thread:$0]  %s218, 1024, %s221, [#allocation3], 256, 128, 8
      %s224 = smul.u32 8, 8
      %s225 = smul.u32 %s224, 1
      %s226 = sshll.u32 %s225, 4
      %227 = dma.done [#allocation3], %s226
      %v228 = vld [vmem:[#allocation2] sm:$0xff]
      %v229 = vld [vmem:[#allocation2 + $0x8] sm:$0xff]
      %v230 = vld [vmem:[#allocation2 + $0x10] sm:$0xff]
      %v231 = vld [vmem:[#allocation2 + $0x18] sm:$0xff]
      %v232 = vld [vmem:[#allocation2 + $0x20] sm:$0xff]
      %v233 = vld [vmem:[#allocation2 + $0x28] sm:$0xff]
      %v234 = vld [vmem:[#allocation2 + $0x30] sm:$0xff]
      %v235 = vld [vmem:[#allocation2 + $0x38] sm:$0xff]
      %v236 = vstv %s216
      %vm237 = vcmp.ge.s32.totalorder %v28, %v236
      %s238 = sadd.s32 %s216, 8
      %v239 = vstv %s238
      %vm240 = vcmp.lt.s32.totalorder %v28, %v239
      %vm241 = vmand %vm237, %vm240
      %v242 = vsel %vm241, 1, 0
      %vm243 = vcmp.eq.s32.totalorder %v242, 1
      %v244 = vsel %vm243, %v228, 0.0
      %v245 = vsel %vm243, %v229, 0.0
      %v246 = vsel %vm243, %v230, 0.0
      %v247 = vsel %vm243, %v231, 0.0
      %v248 = vsel %vm243, %v232, 0.0
      %v249 = vsel %vm243, %v233, 0.0
      %v250 = vsel %vm243, %v234, 0.0
      %v251 = vsel %vm243, %v235, 0.0
      %vm252 = vcmask 130048
      %v253 = vsel %vm252, %v244, 0.0
      %v254 = vsel %vm252, %v245, 0.0
      %v255 = vadd.f32 %v253, %v254
      %v256 = vsel %vm252, %v246, 0.0
      %v257 = vadd.f32 %v255, %v256
      %v258 = vsel %vm252, %v247, 0.0
      %v259 = vadd.f32 %v257, %v258
      %v260 = vsel %vm252, %v248, 0.0
      %v261 = vadd.f32 %v259, %v260
      %v262 = vsel %vm252, %v249, 0.0
      %v263 = vadd.f32 %v261, %v262
      %v264 = vsel %vm252, %v250, 0.0
      %v265 = vadd.f32 %v263, %v264
      %v266 = vsel %vm252, %v251, 0.0
      %v267 = vadd.f32 %v265, %v266
      %268 = vadd.xlane.f32.xlu0 %v267
      %v269 = vpop.xlane.xlu0 %268
      %v270 = vrot.slane %v269, 4
      %v271 = vadd.f32 %v269, %v270
      %v272 = vrot.slane %v271, 2
      %v273 = vadd.f32 %v271, %v272
      %v274 = vrot.slane %v273, 1
      %v275 = vadd.f32 %v273, %v274
      %s276 = vtos %v275
      %s277 = smul.f32 %s276, 0.001953125
      %v278 = vstv %s277
      %v279 = vsel %vm243, %v278, %v228
      %v280 = vsel %vm243, %v278, %v229
      %v281 = vsel %vm243, %v278, %v230
      %v282 = vsel %vm243, %v278, %v231
      %v283 = vsel %vm243, %v278, %v232
      %v284 = vsel %vm243, %v278, %v233
      %v285 = vsel %vm243, %v278, %v234
      %v286 = vsel %vm243, %v278, %v235
      %287 = vst.msk [vmem:[#allocation2] sm:$0xff] %vm252, %v279
      %288 = vst.msk [vmem:[#allocation2 + $0x8] sm:$0xff] %vm252, %v280
      %289 = vst.msk [vmem:[#allocation2 + $0x10] sm:$0xff] %vm252, %v281
      %290 = vst.msk [vmem:[#allocation2 + $0x18] sm:$0xff] %vm252, %v282
      %291 = vst.msk [vmem:[#allocation2 + $0x20] sm:$0xff] %vm252, %v283
      %292 = vst.msk [vmem:[#allocation2 + $0x28] sm:$0xff] %vm252, %v284
      %293 = vst.msk [vmem:[#allocation2 + $0x30] sm:$0xff] %vm252, %v285
      %294 = vst.msk [vmem:[#allocation2 + $0x38] sm:$0xff] %vm252, %v286
      %s296 = sshll.u32 [#allocation2], 4
      %s297 = int_to_ptr.vmem [resolvable:$true] %s296
      %299 = dma.vmem_to_hbm [thread:$0]  %s297, 1024, %s218, [#allocation3], 128, 256, 8
      %s300 = sshll.u32 %s225, 4
      %301 = dma.done [#allocation3], %s300
    $region25: #{tpu_custom_call.1} parent=1 // pred_fallthru
      _
    %302 = vsyncpa [#allocation6], 1
  %303 = vsyncmov [#allocation3]
  %s304 = vpop.sfrf %303
  %p305 = scmp.eq.s32.totalorder %s304, 0
  %p306 = pneg %p305
  %308 = shalt.err (%p306)

</llo_original>
